<compile_context>
chip_gen: v7x
topology: tpu7x:2x2x1
jax: 0.10.0
libtpu: 0.0.40
codegen_flags: <defaults>
</compile_context>

<pallas_src>
from functools import partial

import numpy as np
import jax
import jax.numpy as jnp
from jax.experimental import pallas as pl
from jax.experimental.pallas import tpu as pltpu


HID = 32  # hidden width of the synthetic epsilon model


# ----------------------------- Pallas kernel --------------------------------

def _make_ddim_kernel(use_noise: bool):
    """Fused epsilon-prediction model + DDIM update (channel-major layout).

    coef_ref  : SMEM (3,)        -> [c1, c2, sigma_t]
    x_ref     : VMEM (C, TILE_N) tile of flattened x_t (channel-major)
    eps_ref   : VMEM (C, TILE_N) tile of Gaussian noise (only if use_noise)
    w1t_ref   : VMEM (HID, C)    first-layer weight (transposed), resident
    bias1_ref : VMEM (HID, 1)    b1 + time-embedding, folded, resident
    w2t_ref   : VMEM (C, HID)    second-layer weight (transposed), resident
    b2_ref    : VMEM (C, 1)      resident
    o_ref     : VMEM (C, TILE_N) tile of x_{t-1}
    """

    def _eps_model(x, w1t_ref, bias1_ref, w2t_ref, b2_ref):
        # epsilon_theta = model(x_t, t): pointwise MLP, channel-major.
        h = jnp.dot(w1t_ref[...], x, preferred_element_type=jnp.float32)
        h = h + bias1_ref[...]                               # b1 + temb (folded)
        h = h * pl.reciprocal(1.0 + jnp.exp(-h))             # SiLU (exp -> EUP)
        eps_theta = jnp.dot(w2t_ref[...], h,
                            preferred_element_type=jnp.float32)
        return eps_theta + b2_ref[...]

    if use_noise:
        def kernel(coef_ref, x_ref, eps_ref, w1t_ref, bias1_ref, w2t_ref,
                   b2_ref, o_ref):
            c1 = coef_ref[0]
            c2 = coef_ref[1]
            sigma = coef_ref[2]
            x = x_ref[...]                                   # (C, TILE_N)
            eps_theta = _eps_model(x, w1t_ref, bias1_ref, w2t_ref, b2_ref)
            # x_{t-1} = c1 * x_t + c2 * eps_theta + sigma * noise
            o_ref[...] = c1 * x + c2 * eps_theta + sigma * eps_ref[...]
    else:
        def kernel(coef_ref, x_ref, w1t_ref, bias1_ref, w2t_ref, b2_ref,
                   o_ref):
            c1 = coef_ref[0]
            c2 = coef_ref[1]
            x = x_ref[...]                                   # (C, TILE_N)
            eps_theta = _eps_model(x, w1t_ref, bias1_ref, w2t_ref, b2_ref)
            o_ref[...] = c1 * x + c2 * eps_theta

    return kernel


def _choose_tile_n(n: int, target: int = 8192) -> int:
    """Largest multiple of 128 that divides n and is <= target (else n)."""
    if n <= 128:
        return n
    t = min(target, (n // 128) * 128)
    t = max(t, 128)
    while t >= 128:
        if n % t == 0:
            return t
        t -= 128
    return n


def _ddim_step_pallas(coefs, x_cm, eps_cm, w1t, bias1, w2t, b2, *, use_noise,
                      tile_n):
    c_dim, n = x_cm.shape
    hid = w1t.shape[0]
    grid = (n // tile_n,)

    smem = pl.BlockSpec(memory_space=pltpu.MemorySpace.SMEM)
    tile_spec = pl.BlockSpec((c_dim, tile_n), lambda i: (0, i))

    in_specs = [smem, tile_spec]                              # coefs, x tile
    args = [coefs, x_cm]
    if use_noise:
        in_specs.append(tile_spec)                            # noise tile
        args.append(eps_cm)
    in_specs += [
        pl.BlockSpec((hid, c_dim), lambda i: (0, 0)),         # w1t (resident)
        pl.BlockSpec((hid, 1), lambda i: (0, 0)),             # b1+temb (resident)
        pl.BlockSpec((c_dim, hid), lambda i: (0, 0)),         # w2t (resident)
        pl.BlockSpec((c_dim, 1), lambda i: (0, 0)),           # b2 (resident)
    ]
    args += [w1t, bias1, w2t, b2]

    return pl.pallas_call(
        _make_ddim_kernel(use_noise),
        out_shape=jax.ShapeDtypeStruct((c_dim, n), jnp.float32),
        grid=grid,
        in_specs=in_specs,
        out_specs=pl.BlockSpec((c_dim, tile_n), lambda i: (0, i)),
        compiler_params=pltpu.CompilerParams(
            dimension_semantics=("parallel",),
        ),
    )(*args)


# One jitted scan over the whole trajectory (single compile, single launch).
@partial(jax.jit, static_argnames=("use_noise", "collect", "tile_n"))
def _ddim_sample_scan(x_cm, coefs_seq, bias1_seq, noise_keys, w1t, w2t, b2,
                      use_noise, collect, tile_n):
    def body(x, step_inputs):
        coefs, bias1, nkey = step_inputs
        if use_noise:
            # torch.randn_like(x_t) equivalent, generated per step outside the
            # kernel (portable across TPU HW and interpret mode) and streamed
            # in as a tiled VMEM input.
            eps = jax.random.normal(nkey, x.shape, jnp.float32)
        else:
            eps = None
        x_new = _ddim_step_pallas(coefs, x, eps, w1t, bias1, w2t, b2,
                                  use_noise=use_noise, tile_n=tile_n)
        y = jnp.clip(x_new, -1.0, 1.0) if collect else None
        return x_new, y

    return jax.lax.scan(body, x_cm, (coefs_seq, bias1_seq, noise_keys))


# --------------------------- synthetic eps-model -----------------------------

def make_model_params(key, channels, hid=HID):
    k1, k2 = jax.random.split(key)
    w1 = jax.random.normal(k1, (channels, hid), jnp.float32) * 0.1
    b1 = jnp.zeros((1, hid), jnp.float32)
    w2 = jax.random.normal(k2, (hid, channels), jnp.float32) * 0.1
    b2 = jnp.zeros((1, channels), jnp.float32)
    return {"w1": w1, "b1": b1, "w2": w2, "b2": b2}


def timestep_embedding_batch(t, dim=HID):
    """Sinusoidal embedding for a vector of timesteps: (steps,) -> (steps, dim)."""
    half = dim // 2
    freqs = jnp.exp(-jnp.log(10000.0)
                    * jnp.arange(half, dtype=jnp.float32) / half)
    args = jnp.asarray(t, jnp.float32)[:, None] * freqs[None, :]
    return jnp.concatenate([jnp.sin(args), jnp.cos(args)], axis=1)


# ------------------------------ DDIM sampler ---------------------------------

class DDIMSamplerPallas:
    def __init__(self, model_params, num_timesteps=1000,
                 beta_start=0.0001, beta_end=0.02):
        self.T = num_timesteps
        beta_t = jnp.linspace(beta_start, beta_end, num_timesteps,
                              dtype=jnp.float32)
        alpha_t = 1.0 - beta_t
        self.alpha_t_bar = jnp.cumprod(alpha_t, axis=0)

        hid = model_params["w1"].shape[1]
        c = model_params["w1"].shape[0]
        # Channel-major weights (precomputed once, not per step).
        self.w1t = jnp.transpose(model_params["w1"])            # (HID, C)
        self.b1 = jnp.reshape(model_params["b1"], (hid, 1))     # (HID, 1)
        self.w2t = jnp.transpose(model_params["w2"])            # (C, HID)
        self.b2 = jnp.reshape(model_params["b2"], (c, 1))       # (C, 1)

    def __call__(self, x_t, steps=1, method="linear", eta=0.0,
                 only_return_x_0=True, interval=1, key=None):
        if key is None:
            key = jax.random.PRNGKey(1)

        B, C, H, W = x_t.shape
        N = B * H * W

        if method == "linear":
            a = self.T // steps
            time_steps = np.asarray(list(range(0, self.T, a)))
        elif method == "quadratic":
            time_steps = (np.linspace(0, np.sqrt(self.T * 0.8), steps) ** 2
                          ).astype(np.int64)
        else:
            raise NotImplementedError(
                f"sampling method {method} is not implemented!")
        time_steps_prev = np.concatenate([[0], time_steps[:-1]])

        # Execution order = reversed(range(steps)).
        exec_idx = np.arange(steps - 1, -1, -1)
        ts = time_steps[exec_idx]
        ts_prev = time_steps_prev[exec_idx]

        # Per-step scalar coefficient table (extract(): t is constant across
        # the batch, so the (B,1,1,1) broadcast is a scalar broadcast).
        alpha_t = self.alpha_t_bar[ts]
        alpha_prev = self.alpha_t_bar[ts_prev]
        sigma = eta * jnp.sqrt((1.0 - alpha_prev) / (1.0 - alpha_t)
                               * (1.0 - alpha_t / alpha_prev))
        c1 = jnp.sqrt(alpha_prev / alpha_t)
        c2 = (jnp.sqrt(jnp.maximum(1.0 - alpha_prev - sigma ** 2, 0.0))
              - jnp.sqrt(alpha_prev * (1.0 - alpha_t) / alpha_t))
        coefs_seq = jnp.stack([c1, c2, sigma], axis=1).astype(jnp.float32)

        # Fold b1 + time embedding into a single per-step (HID, 1) bias.
        temb_seq = timestep_embedding_batch(ts)                  # (steps, HID)
        bias1_seq = temb_seq[:, :, None] + self.b1[None, :, :]   # (steps, HID, 1)

        # Per-step noise keys (only consumed when eta > 0).
        noise_keys = jax.random.split(key, steps)                # (steps,) keys

        # NCHW -> channel-major (C, N): converted ONCE for the whole trajectory.
        x_cm = jnp.transpose(x_t, (1, 0, 2, 3)).reshape(C, N).astype(jnp.float32)

        tile_n = _choose_tile_n(N)
        use_noise = float(eta) != 0.0
        collect = not only_return_x_0

        x_final_cm, ys = _ddim_sample_scan(
            x_cm, coefs_seq, bias1_seq, noise_keys,
            self.w1t, self.w2t, self.b2,
            use_noise=use_noise, collect=collect, tile_n=tile_n)

        def cm_to_nchw(x2d):
            return jnp.transpose(x2d.reshape(C, B, H, W), (1, 0, 2, 3))

        x_final = cm_to_nchw(x_final_cm)
        if only_return_x_0:
            return x_final

        # Saved intermediates (static mask, matches the PyTorch condition
        # (steps - i) % interval == 0 or i == 0 with i = steps-1-j).
        save_idx = np.asarray(
            [j for j in range(steps)
             if ((j + 1) % interval == 0) or (j == steps - 1)], dtype=np.int64)
        traj = ys[save_idx]                                   # (S, C, N)
        traj = jnp.transpose(traj.reshape(-1, C, B, H, W), (2, 0, 1, 3, 4))
        return jnp.concatenate([x_t[:, None], traj], axis=1)  # (B, S+1, C, H, W)


# ---------------------------------- main -------------------------------------

if __name__ == "__main__":
    key = jax.random.PRNGKey(0)
    k_params, k_x, k_sample = jax.random.split(key, 3)

    B, C, H, W = 2, 4, 16, 16
    x_t = jax.random.normal(k_x, (B, C, H, W), dtype=jnp.float32)

    params = make_model_params(k_params, C)
    sampler = DDIMSamplerPallas(params, num_timesteps=1000,
                                beta_start=0.0001, beta_end=0.02)

    # DDIM sampling (eta=0.0): noise-free kernel variant, 5 steps, only x_0.
    x0 = sampler(x_t, steps=5, method="linear", eta=0.0,
                 only_return_x_0=True, key=k_sample)
    x0 = jax.block_until_ready(x0)
    assert x0.shape == (B, C, H, W)
    assert bool(jnp.all(jnp.isfinite(x0)))

    # DDPM-like path (eta=1.0): noise streamed into the kernel + trajectory.
    traj = sampler(x_t, steps=4, method="linear", eta=1.0,
                   only_return_x_0=False, interval=2, key=k_sample)
    traj = jax.block_until_ready(traj)
    assert traj.shape[0] == B and traj.shape[2:] == (C, H, W)
    assert bool(jnp.all(jnp.isfinite(traj)))

    print("KERNEL_OK")
</pallas_src>

<mosaic_0001>
module attributes {stable_mosaic.version = 11 : i64} {
  func.func @kernel(%arg0: i32, %arg1: memref<3xf32, #tpu.memory_space<smem>>, %arg2: memref<4x512xf32, #tpu.memory_space<vmem>>, %arg3: memref<32x4xf32, #tpu.memory_space<vmem>>, %arg4: memref<32x1xf32, #tpu.memory_space<vmem>>, %arg5: memref<4x32xf32, #tpu.memory_space<vmem>>, %arg6: memref<4x1xf32, #tpu.memory_space<vmem>>, %arg7: memref<4x512xf32, #tpu.memory_space<vmem>>) attributes {dimension_semantics = [#tpu.dimension_semantics<parallel>], iteration_bounds = array<i64: 1>, scalar_prefetch = 0 : i64, scratch_operands = 0 : i64, tpu.core_type = #tpu.core_type<tc>, window_params = [{transform_indices = @transform_0, window_bounds = array<i64: 3>}, {transform_indices = @transform_1, window_bounds = array<i64: 4, 512>}, {pipeline_mode = #tpu.pipeline_mode<synchronous>, transform_indices = @transform_2, window_bounds = array<i64: 32, 4>}, {pipeline_mode = #tpu.pipeline_mode<synchronous>, transform_indices = @transform_3, window_bounds = array<i64: 32, 1>}, {pipeline_mode = #tpu.pipeline_mode<synchronous>, transform_indices = @transform_4, window_bounds = array<i64: 4, 32>}, {pipeline_mode = #tpu.pipeline_mode<synchronous>, transform_indices = @transform_5, window_bounds = array<i64: 4, 1>}, {transform_indices = @transform_6, window_bounds = array<i64: 4, 512>}]} {
    %c0 = arith.constant 0 : index
    %0 = memref.load %arg1[%c0] : memref<3xf32, #tpu.memory_space<smem>>
    %c1 = arith.constant 1 : index
    %1 = memref.load %arg1[%c1] : memref<3xf32, #tpu.memory_space<smem>>
    %c0_0 = arith.constant 0 : index
    %c0_1 = arith.constant 0 : index
    %2 = vector.load %arg2[%c0_0, %c0_1] : memref<4x512xf32, #tpu.memory_space<vmem>>, vector<4x512xf32>
    %c0_2 = arith.constant 0 : index
    %c0_3 = arith.constant 0 : index
    %3 = vector.load %arg3[%c0_2, %c0_3] : memref<32x4xf32, #tpu.memory_space<vmem>>, vector<32x4xf32>
    %cst = arith.constant dense<0.000000e+00> : vector<32x512xf32>
    %4 = tpu.matmul %3, %2, %cst {dimension_numbers = #tpu.dot_dimension_numbers<[1], [0], [0], [1], [0, 0, 1, 1], [], []>} : vector<32x4xf32>, vector<4x512xf32>, vector<32x512xf32> -> vector<32x512xf32>
    %c0_4 = arith.constant 0 : index
    %c0_5 = arith.constant 0 : index
    %5 = vector.load %arg4[%c0_4, %c0_5] : memref<32x1xf32, #tpu.memory_space<vmem>>, vector<32x1xf32>
    %6 = vector.broadcast %5 : vector<32x1xf32> to vector<32x512xf32>
    %7 = arith.addf %4, %6 : vector<32x512xf32>
    %cst_6 = arith.constant 0.000000e+00 : f32
    %8 = vector.broadcast %cst_6 : f32 to vector<32x512xf32>
    %9 = arith.subf %8, %7 : vector<32x512xf32>
    %10 = math.exp %9 : vector<32x512xf32>
    %cst_7 = arith.constant 1.000000e+00 : f32
    %11 = vector.broadcast %cst_7 : f32 to vector<32x512xf32>
    %12 = arith.addf %11, %10 : vector<32x512xf32>
    %13 = tpu.reciprocal %12 : vector<32x512xf32> -> vector<32x512xf32>
    %14 = arith.mulf %7, %13 : vector<32x512xf32>
    %c0_8 = arith.constant 0 : index
    %c0_9 = arith.constant 0 : index
    %15 = vector.load %arg5[%c0_8, %c0_9] : memref<4x32xf32, #tpu.memory_space<vmem>>, vector<4x32xf32>
    %cst_10 = arith.constant dense<0.000000e+00> : vector<4x512xf32>
    %16 = tpu.matmul %15, %14, %cst_10 {dimension_numbers = #tpu.dot_dimension_numbers<[1], [0], [0], [1], [0, 0, 1, 1], [], []>} : vector<4x32xf32>, vector<32x512xf32>, vector<4x512xf32> -> vector<4x512xf32>
    %c0_11 = arith.constant 0 : index
    %c0_12 = arith.constant 0 : index
    %17 = vector.load %arg6[%c0_11, %c0_12] : memref<4x1xf32, #tpu.memory_space<vmem>>, vector<4x1xf32>
    %18 = vector.broadcast %17 : vector<4x1xf32> to vector<4x512xf32>
    %19 = arith.addf %16, %18 : vector<4x512xf32>
    %20 = vector.broadcast %0 : f32 to vector<4x512xf32>
    %21 = arith.mulf %20, %2 : vector<4x512xf32>
    %22 = vector.broadcast %1 : f32 to vector<4x512xf32>
    %23 = arith.mulf %22, %19 : vector<4x512xf32>
    %24 = arith.addf %21, %23 : vector<4x512xf32>
    %c0_13 = arith.constant 0 : index
    %c0_14 = arith.constant 0 : index
    %25 = vector.load %arg7[%c0_13, %c0_14] : memref<4x512xf32, #tpu.memory_space<vmem>>, vector<4x512xf32>
    tpu.vector_store %arg7[%c0_13, %c0_14], %24 {strides = array<i32>} : memref<4x512xf32, #tpu.memory_space<vmem>>, vector<4x512xf32>,
    return
  }
  func.func @transform_0(%arg0: i32) -> i32 {
    %c0_i32 = arith.constant 0 : i32
    %c0_i32_0 = arith.constant 0 : i32
    return %c0_i32 : i32
  }
  func.func @transform_1(%arg0: i32) -> (i32, i32) {
    %c0_i32 = arith.constant 0 : i32
    %c0_i32_0 = arith.constant 0 : i32
    return %c0_i32, %arg0 : i32, i32
  }
  func.func @transform_2(%arg0: i32) -> (i32, i32) {
    %c0_i32 = arith.constant 0 : i32
    %c0_i32_0 = arith.constant 0 : i32
    %c0_i32_1 = arith.constant 0 : i32
    return %c0_i32, %c0_i32_0 : i32, i32
  }
  func.func @transform_3(%arg0: i32) -> (i32, i32) {
    %c0_i32 = arith.constant 0 : i32
    %c0_i32_0 = arith.constant 0 : i32
    %c0_i32_1 = arith.constant 0 : i32
    return %c0_i32, %c0_i32_0 : i32, i32
  }
  func.func @transform_4(%arg0: i32) -> (i32, i32) {
    %c0_i32 = arith.constant 0 : i32
    %c0_i32_0 = arith.constant 0 : i32
    %c0_i32_1 = arith.constant 0 : i32
    return %c0_i32, %c0_i32_0 : i32, i32
  }
  func.func @transform_5(%arg0: i32) -> (i32, i32) {
    %c0_i32 = arith.constant 0 : i32
    %c0_i32_0 = arith.constant 0 : i32
    %c0_i32_1 = arith.constant 0 : i32
    return %c0_i32, %c0_i32_0 : i32, i32
  }
  func.func @transform_6(%arg0: i32) -> (i32, i32) {
    %c0_i32 = arith.constant 0 : i32
    %c0_i32_0 = arith.constant 0 : i32
    return %c0_i32, %arg0 : i32, i32
  }
}

</mosaic_0001>

<llo_original>
// kernel: closed_call.4
$region0: #{closed_call.4}
  #allocation0 [shape = 'u32[]', space=smem, size = 0x4, offset = 0x4, fixed_abs, tag = 'smem constant byte address 0x4 - core index']
  #allocation1 [shape = 'u32[144,128]{1,0:T(1,128)}', space=vmem, size = 0x12000, scoped, tag = 'internal scratch']
  %s0 = inlined_call_operand.vmem [shape: f32[3], index: 0, kind: input, shape index: {}]
  %s1 = inlined_call_operand.vmem [shape: f32[4,512], index: 1, kind: input, shape index: {}]
  %s2 = inlined_call_operand.vmem [shape: f32[32,4], index: 2, kind: input, shape index: {}]
  %s3 = inlined_call_operand.vmem [shape: f32[32,1], index: 3, kind: input, shape index: {}]
  %s4 = inlined_call_operand.vmem [shape: f32[4,32], index: 4, kind: input, shape index: {}]
  %s5 = inlined_call_operand.vmem [shape: f32[4,1], index: 5, kind: input, shape index: {}]
  %s6 = inlined_call_operand.vmem [shape: f32[4,512], index: 6, kind: output, shape index: {}]
  %s7 = sld [smem:[#allocation0]]
  $region38: #{closed_call.4} parent=0
    _
  %s9 = ssub.s32 1, %s7
  %s10 = scalar_select 0, %s9, %s7
  $region1: #{closed_call.4} parent=0
    #allocation2 [shape = 'u8[512]{0}', space=smem, size = 0x200, scoped, tag = 'input window, operand 0, single buffered']
    #allocation3 [shape = 's32[1]{0}', space=sflag, size = 0x4, scoped, tag = 'scoped memory for closed_call.4']
    %11 = vsyncpa [#allocation3], 0
    // Predicated region
    $region2: #{closed_call.4} parent=1 // pred_check
      _
    $region3: #{closed_call.4} parent=1 // pred_check_branch
      %13 = sbr.rel (0) target = $region5
    $region4: #{closed_call.4} parent=1 // pred_region
      %s15 = ssub.s32 16, 16
      %16 = vsyncadd [#allocation3], %s15
      %s18 = sshll.u32 %s0, 4
      %s19 = int_to_ptr.vmem [resolvable:$true] %s18
      %21 = dma.vmem_to_smem %s19, 16, [#allocation2], [#allocation3]
    $region5: #{closed_call.4} parent=1 // pred_fallthru
      _
    // Predicated region
    $region6: #{closed_call.4} parent=1 // pred_check
      _
    $region7: #{closed_call.4} parent=1 // pred_check_branch
      %23 = sbr.rel (0) target = $region9
    $region8: #{closed_call.4} parent=1 // pred_region
      _
    $region9: #{closed_call.4} parent=1 // pred_fallthru
      _
    // Predicated region
    $region10: #{closed_call.4} parent=1 // pred_check
      _
    $region11: #{closed_call.4} parent=1 // pred_check_branch
      %25 = sbr.rel (0) target = $region13
    $region12: #{closed_call.4} parent=1 // pred_region
      _
    $region13: #{closed_call.4} parent=1 // pred_fallthru
      _
    // Predicated region
    $region14: #{closed_call.4} parent=1 // pred_check
      _
    $region15: #{closed_call.4} parent=1 // pred_check_branch
      %27 = sbr.rel (0) target = $region17
    $region16: #{closed_call.4} parent=1 // pred_region
      _
    $region17: #{closed_call.4} parent=1 // pred_fallthru
      _
    // Predicated region
    $region18: #{closed_call.4} parent=1 // pred_check
      _
    $region19: #{closed_call.4} parent=1 // pred_check_branch
      %29 = sbr.rel (0) target = $region21
    $region20: #{closed_call.4} parent=1 // pred_region
      _
    $region21: #{closed_call.4} parent=1 // pred_fallthru
      _
    // Predicated region
    $region22: #{closed_call.4} parent=1 // pred_check
      _
    $region23: #{closed_call.4} parent=1 // pred_check_branch
      %31 = sbr.rel (0) target = $region25
    $region24: #{closed_call.4} parent=1 // pred_region
      _
    $region25: #{closed_call.4} parent=1 // pred_fallthru
      _
    // Predicated region
    $region26: #{closed_call.4} parent=1 // pred_check
      _
    $region27: #{closed_call.4} parent=1 // pred_check_branch
      %33 = sbr.rel (0) target = $region29
    $region28: #{closed_call.4} parent=1 // pred_region
      %34 = dma.done [#allocation3], 16
    $region29: #{closed_call.4} parent=1 // pred_fallthru
      _
    %35 = sfence
    %s36 = sld [smem:[#allocation2]]
    %s37 = sld [smem:[#allocation2 + $0x1]]
    %v38 = vld [vmem:[%s1] sm:$0xff]
    %v39 = vld [vmem:[%s1 + $0x8] sm:$0xff]
    %v40 = vld [vmem:[%s2] sm:$0xff]
    %v41 = vld [vmem:[%s2 + $0x8] sm:$0xff]
    %v42 = vld [vmem:[%s2 + $0x10] sm:$0xff]
    %v43 = vld [vmem:[%s2 + $0x18] sm:$0xff]
    %v44 = vld [vmem:[%s3] sm:$0xff]
    %v45 = vld [vmem:[%s3 + $0x8] sm:$0xff]
    %v46 = vld [vmem:[%s3 + $0x10] sm:$0xff]
    %v47 = vld [vmem:[%s3 + $0x18] sm:$0xff]
    %49 = vset.pattern.permute.xlu0 0
    %50 = vperm.xlu0 %49, %v44
    %v51 = vpop.permute.xlu0 %50
    %54 = vset.pattern.permute.xlu0 0
    %55 = vperm.xlu0 %54, %v45
    %v56 = vpop.permute.xlu0 %55
    %59 = vset.pattern.permute.xlu0 0
    %60 = vperm.xlu0 %59, %v46
    %v61 = vpop.permute.xlu0 %60
    %64 = vset.pattern.permute.xlu0 0
    %65 = vperm.xlu0 %64, %v47
    %v66 = vpop.permute.xlu0 %65
    %v70 = vcombine.high %v38, %v38
    %v71 = vcombine.high %v39, %v39
    %vm72 = vcmask 31744
    %v74 = vsel %vm72, %v40, 0
    %v77 = vsel %vm72, %v41, 0
    %v80 = vsel %vm72, %v42, 0
    %v83 = vsel %vm72, %v43, 0
    %vm85 = vcmask 1043456
    %v86 = vsel %vm85, %v38, 0
    %v88 = vsel %vm85, %v70, 0
    %v90 = vsel %vm85, %v39, 0
    %v92 = vsel %vm85, %v71, 0
    %94 = vmatprep.subr.mxu0 %v88
    %95 = vmatpush1.msra.mxu0 %v86
    %96 = vmatprep.subr.mxu0 0.0
    %97 = vmatpush1.msra.mxu0 0.0
    %98 = vmatprep.subr.mxu0 0.0
    %99 = vmatpush1.msra.mxu0 0.0
    %100 = vmatprep.subr.mxu0 0.0
    %101 = vmatpush1.msra.mxu0 0.0
    %102 = vmatprep.subr.mxu0 0.0
    %103 = vmatpush1.msra.mxu0 0.0
    %104 = vmatprep.subr.mxu0 0.0
    %105 = vmatpush1.msra.mxu0 0.0
    %106 = vmatprep.subr.mxu0 0.0
    %107 = vmatpush1.msra.mxu0 0.0
    %108 = vmatprep.subr.mxu0 0.0
    %109 = vmatpush1.msra.mxu0 0.0
    %110 = vmatprep.subr.mxu0 0.0
    %111 = vmatpush1.msra.mxu0 0.0
    %112 = vmatprep.subr.mxu0 0.0
    %113 = vmatpush1.msra.mxu0 0.0
    %114 = vmatprep.subr.mxu0 0.0
    %115 = vmatpush1.msra.mxu0 0.0
    %116 = vmatprep.subr.mxu0 0.0
    %117 = vmatpush1.msra.mxu0 0.0
    %118 = vmatprep.subr.mxu0 0.0
    %119 = vmatpush1.msra.mxu0 0.0
    %120 = vmatprep.subr.mxu0 0.0
    %121 = vmatpush1.msra.mxu0 0.0
    %122 = vmatprep.subr.mxu0 0.0
    %123 = vmatpush1.msra.mxu0 0.0
    %124 = vmatprep.subr.mxu0 0.0
    %125 = vmatpush1.msra.mxu0 0.0
    %126 = vmatprep.subr.mxu0 0.0
    %127 = vmatpush1.msra.mxu0 0.0
    %128 = vmatprep.subr.mxu0 0.0
    %129 = vmatpush1.msra.mxu0 0.0
    %130 = vmatprep.subr.mxu0 0.0
    %131 = vmatpush1.msra.mxu0 0.0
    %132 = vmatprep.subr.mxu0 0.0
    %133 = vmatpush1.msra.mxu0 0.0
    %134 = vmatprep.subr.mxu0 0.0
    %135 = vmatpush1.msra.mxu0 0.0
    %136 = vmatprep.subr.mxu0 0.0
    %137 = vmatpush1.msra.mxu0 0.0
    %138 = vmatprep.subr.mxu0 0.0
    %139 = vmatpush1.msra.mxu0 0.0
    %140 = vmatprep.subr.mxu0 0.0
    %141 = vmatpush1.msra.mxu0 0.0
    %142 = vmatprep.subr.mxu0 0.0
    %143 = vmatpush1.msra.mxu0 0.0
    %144 = vmatprep.subr.mxu0 0.0
    %145 = vmatpush1.msra.mxu0 0.0
    %146 = vmatprep.subr.mxu0 0.0
    %147 = vmatpush1.msra.mxu0 0.0
    %148 = vmatprep.subr.mxu0 0.0
    %149 = vmatpush1.msra.mxu0 0.0
    %150 = vmatprep.subr.mxu0 0.0
    %151 = vmatpush1.msra.mxu0 0.0
    %152 = vmatprep.subr.mxu0 0.0
    %153 = vmatpush1.msra.mxu0 0.0
    %154 = vmatprep.subr.mxu0 0.0
    %155 = vmatpush1.msra.mxu0 0.0
    %156 = vmatprep.subr.mxu0 0.0
    %157 = vmatpush1.msra.mxu0 0.0
    %158 = vmatprep.mubr.f32.mxu0 0.0
    %159 = vmatmul.mubr.f32.gmra.mrb[0].mxu0 %v74
    %v160 = vpop.f32.mrb[0].mxu0
    %v161 = vadd.f32 %v51, %v160
    %v162 = vpop.f32.mrb[0].mxu0
    %v163 = vadd.f32 %v51, %v162
    %164 = vmatprep.mubr.f32.mxu0 0.0
    %165 = vmatmul.mubr.f32.gmra.mrb[0].mxu0 %v77
    %v166 = vpop.f32.mrb[0].mxu0
    %v167 = vadd.f32 %v56, %v166
    %v168 = vpop.f32.mrb[0].mxu0
    %v169 = vadd.f32 %v56, %v168
    %170 = vmatprep.mubr.f32.mxu0 0.0
    %171 = vmatmul.mubr.f32.gmra.mrb[0].mxu0 %v80
    %v172 = vpop.f32.mrb[0].mxu0
    %v173 = vadd.f32 %v61, %v172
    %v174 = vpop.f32.mrb[0].mxu0
    %v175 = vadd.f32 %v61, %v174
    %176 = vmatprep.mubr.f32.mxu0 0.0
    %177 = vmatmul.mubr.f32.gmra.mrb[0].mxu0 %v83
    %v178 = vpop.f32.mrb[0].mxu0
    %v179 = vadd.f32 %v66, %v178
    %v180 = vpop.f32.mrb[0].mxu0
    %v181 = vadd.f32 %v66, %v180
    %182 = vdwg.mxu0
    %183 = vmatprep.subr.mxu0 %v92
    %184 = vmatpush1.msra.mxu0 %v90
    %185 = vmatprep.subr.mxu0 0.0
    %186 = vmatpush1.msra.mxu0 0.0
    %187 = vmatprep.subr.mxu0 0.0
    %188 = vmatpush1.msra.mxu0 0.0
    %189 = vmatprep.subr.mxu0 0.0
    %190 = vmatpush1.msra.mxu0 0.0
    %191 = vmatprep.subr.mxu0 0.0
    %192 = vmatpush1.msra.mxu0 0.0
    %193 = vmatprep.subr.mxu0 0.0
    %194 = vmatpush1.msra.mxu0 0.0
    %195 = vmatprep.subr.mxu0 0.0
    %196 = vmatpush1.msra.mxu0 0.0
    %197 = vmatprep.subr.mxu0 0.0
    %198 = vmatpush1.msra.mxu0 0.0
    %199 = vmatprep.subr.mxu0 0.0
    %200 = vmatpush1.msra.mxu0 0.0
    %201 = vmatprep.subr.mxu0 0.0
    %202 = vmatpush1.msra.mxu0 0.0
    %203 = vmatprep.subr.mxu0 0.0
    %204 = vmatpush1.msra.mxu0 0.0
    %205 = vmatprep.subr.mxu0 0.0
    %206 = vmatpush1.msra.mxu0 0.0
    %207 = vmatprep.subr.mxu0 0.0
    %208 = vmatpush1.msra.mxu0 0.0
    %209 = vmatprep.subr.mxu0 0.0
    %210 = vmatpush1.msra.mxu0 0.0
    %211 = vmatprep.subr.mxu0 0.0
    %212 = vmatpush1.msra.mxu0 0.0
    %213 = vmatprep.subr.mxu0 0.0
    %214 = vmatpush1.msra.mxu0 0.0
    %215 = vmatprep.subr.mxu0 0.0
    %216 = vmatpush1.msra.mxu0 0.0
    %217 = vmatprep.subr.mxu0 0.0
    %218 = vmatpush1.msra.mxu0 0.0
    %219 = vmatprep.subr.mxu0 0.0
    %220 = vmatpush1.msra.mxu0 0.0
    %221 = vmatprep.subr.mxu0 0.0
    %222 = vmatpush1.msra.mxu0 0.0
    %223 = vmatprep.subr.mxu0 0.0
    %224 = vmatpush1.msra.mxu0 0.0
    %225 = vmatprep.subr.mxu0 0.0
    %226 = vmatpush1.msra.mxu0 0.0
    %227 = vmatprep.subr.mxu0 0.0
    %228 = vmatpush1.msra.mxu0 0.0
    %229 = vmatprep.subr.mxu0 0.0
    %230 = vmatpush1.msra.mxu0 0.0
    %231 = vmatprep.subr.mxu0 0.0
    %232 = vmatpush1.msra.mxu0 0.0
    %233 = vmatprep.subr.mxu0 0.0
    %234 = vmatpush1.msra.mxu0 0.0
    %235 = vmatprep.subr.mxu0 0.0
    %236 = vmatpush1.msra.mxu0 0.0
    %237 = vmatprep.subr.mxu0 0.0
    %238 = vmatpush1.msra.mxu0 0.0
    %239 = vmatprep.subr.mxu0 0.0
    %240 = vmatpush1.msra.mxu0 0.0
    %241 = vmatprep.subr.mxu0 0.0
    %242 = vmatpush1.msra.mxu0 0.0
    %243 = vmatprep.subr.mxu0 0.0
    %244 = vmatpush1.msra.mxu0 0.0
    %245 = vmatprep.subr.mxu0 0.0
    %246 = vmatpush1.msra.mxu0 0.0
    %247 = vmatprep.mubr.f32.mxu0 0.0
    %248 = vmatmul.mubr.f32.gmra.mrb[0].mxu0 %v74
    %v249 = vpop.f32.mrb[0].mxu0
    %v250 = vadd.f32 %v51, %v249
    %v251 = vpop.f32.mrb[0].mxu0
    %v252 = vadd.f32 %v51, %v251
    %253 = vmatprep.mubr.f32.mxu0 0.0
    %254 = vmatmul.mubr.f32.gmra.mrb[0].mxu0 %v77
    %v255 = vpop.f32.mrb[0].mxu0
    %v256 = vadd.f32 %v56, %v255
    %v257 = vpop.f32.mrb[0].mxu0
    %v258 = vadd.f32 %v56, %v257
    %259 = vmatprep.mubr.f32.mxu0 0.0
    %260 = vmatmul.mubr.f32.gmra.mrb[0].mxu0 %v80
    %v261 = vpop.f32.mrb[0].mxu0
    %v262 = vadd.f32 %v61, %v261
    %v263 = vpop.f32.mrb[0].mxu0
    %v264 = vadd.f32 %v61, %v263
    %265 = vmatprep.mubr.f32.mxu0 0.0
    %266 = vmatmul.mubr.f32.gmra.mrb[0].mxu0 %v83
    %v267 = vpop.f32.mrb[0].mxu0
    %v268 = vadd.f32 %v66, %v267
    %v269 = vpop.f32.mrb[0].mxu0
    %v270 = vadd.f32 %v66, %v269
    %271 = vdwg.mxu0
    %v272 = vsub.f32 0.0, %v161
    %v273 = vsub.f32 0.0, %v163
    %v274 = vsub.f32 0.0, %v250
    %v275 = vsub.f32 0.0, %v252
    %v276 = vsub.f32 0.0, %v167
    %v277 = vsub.f32 0.0, %v169
    %v278 = vsub.f32 0.0, %v256
    %v279 = vsub.f32 0.0, %v258
    %v280 = vsub.f32 0.0, %v173
    %v281 = vsub.f32 0.0, %v175
    %v282 = vsub.f32 0.0, %v262
    %v283 = vsub.f32 0.0, %v264
    %v284 = vsub.f32 0.0, %v179
    %v285 = vsub.f32 0.0, %v181
    %v286 = vsub.f32 0.0, %v268
    %v287 = vsub.f32 0.0, %v270
    %v288 = vmul.f32 %v272, 1.442695
    %v289 = vpow.pop %v288
    %v290 = vmul.f32 %v273, 1.442695
    %v291 = vpow.pop %v290
    %v292 = vmul.f32 %v274, 1.442695
    %v293 = vpow.pop %v292
    %v294 = vmul.f32 %v275, 1.442695
    %v295 = vpow.pop %v294
    %v296 = vmul.f32 %v276, 1.442695
    %v297 = vpow.pop %v296
    %v298 = vmul.f32 %v277, 1.442695
    %v299 = vpow.pop %v298
    %v300 = vmul.f32 %v278, 1.442695
    %v301 = vpow.pop %v300
    %v302 = vmul.f32 %v279, 1.442695
    %v303 = vpow.pop %v302
    %v304 = vmul.f32 %v280, 1.442695
    %v305 = vpow.pop %v304
    %v306 = vmul.f32 %v281, 1.442695
    %v307 = vpow.pop %v306
    %v308 = vmul.f32 %v282, 1.442695
    %v309 = vpow.pop %v308
    %v310 = vmul.f32 %v283, 1.442695
    %v311 = vpow.pop %v310
    %v312 = vmul.f32 %v284, 1.442695
    %v313 = vpow.pop %v312
    %v314 = vmul.f32 %v285, 1.442695
    %v315 = vpow.pop %v314
    %v316 = vmul.f32 %v286, 1.442695
    %v317 = vpow.pop %v316
    %v318 = vmul.f32 %v287, 1.442695
    %v319 = vpow.pop %v318
    %v320 = vadd.f32 %v289, 1.0
    %v321 = vadd.f32 %v291, 1.0
    %v322 = vadd.f32 %v293, 1.0
    %v323 = vadd.f32 %v295, 1.0
    %v324 = vadd.f32 %v297, 1.0
    %v325 = vadd.f32 %v299, 1.0
    %v326 = vadd.f32 %v301, 1.0
    %v327 = vadd.f32 %v303, 1.0
    %v328 = vadd.f32 %v305, 1.0
    %v329 = vadd.f32 %v307, 1.0
    %v330 = vadd.f32 %v309, 1.0
    %v331 = vadd.f32 %v311, 1.0
    %v332 = vadd.f32 %v313, 1.0
    %v333 = vadd.f32 %v315, 1.0
    %v334 = vadd.f32 %v317, 1.0
    %v335 = vadd.f32 %v319, 1.0
    %v336 = vrcp.pop %v320
    %v337 = vrcp.pop %v321
    %v338 = vrcp.pop %v322
    %v339 = vrcp.pop %v323
    %v340 = vrcp.pop %v324
    %v341 = vrcp.pop %v325
    %v342 = vrcp.pop %v326
    %v343 = vrcp.pop %v327
    %v344 = vrcp.pop %v328
    %v345 = vrcp.pop %v329
    %v346 = vrcp.pop %v330
    %v347 = vrcp.pop %v331
    %v348 = vrcp.pop %v332
    %v349 = vrcp.pop %v333
    %v350 = vrcp.pop %v334
    %v351 = vrcp.pop %v335
    %v352 = vmul.f32 %v161, %v336
    %v353 = vmul.f32 %v163, %v337
    %v354 = vmul.f32 %v250, %v338
    %v355 = vmul.f32 %v252, %v339
    %v356 = vmul.f32 %v167, %v340
    %v357 = vmul.f32 %v169, %v341
    %v358 = vmul.f32 %v256, %v342
    %v359 = vmul.f32 %v258, %v343
    %v360 = vmul.f32 %v173, %v344
    %v361 = vmul.f32 %v175, %v345
    %v362 = vmul.f32 %v262, %v346
    %v363 = vmul.f32 %v264, %v347
    %v364 = vmul.f32 %v179, %v348
    %v365 = vmul.f32 %v181, %v349
    %v366 = vmul.f32 %v268, %v350
    %v367 = vmul.f32 %v270, %v351
    %v368 = vld [vmem:[%s4] sm:$0xf]
    %v369 = vld [vmem:[%s5] sm:$0xf]
    %371 = vset.pattern.permute.xlu0 0
    %372 = vperm.xlu0 %371, %v369
    %v373 = vpop.permute.xlu0 %372
    %vm375 = vcmask 261120
    %v377 = vsel %vm375, %v368, 0
    %379 = vmatprep.subr.mxu0 %v353
    %380 = vmatpush1.msra.mxu0 %v352
    %381 = vmatprep.subr.mxu0 %v357
    %382 = vmatpush1.msra.mxu0 %v356
    %383 = vmatprep.subr.mxu0 %v361
    %384 = vmatpush1.msra.mxu0 %v360
    %385 = vmatprep.subr.mxu0 %v365
    %386 = vmatpush1.msra.mxu0 %v364
    %387 = vmatprep.subr.mxu0 0.0
    %388 = vmatpush1.msra.mxu0 0.0
    %389 = vmatprep.subr.mxu0 0.0
    %390 = vmatpush1.msra.mxu0 0.0
    %391 = vmatprep.subr.mxu0 0.0
    %392 = vmatpush1.msra.mxu0 0.0
    %393 = vmatprep.subr.mxu0 0.0
    %394 = vmatpush1.msra.mxu0 0.0
    %395 = vmatprep.subr.mxu0 0.0
    %396 = vmatpush1.msra.mxu0 0.0
    %397 = vmatprep.subr.mxu0 0.0
    %398 = vmatpush1.msra.mxu0 0.0
    %399 = vmatprep.subr.mxu0 0.0
    %400 = vmatpush1.msra.mxu0 0.0
    %401 = vmatprep.subr.mxu0 0.0
    %402 = vmatpush1.msra.mxu0 0.0
    %403 = vmatprep.subr.mxu0 0.0
    %404 = vmatpush1.msra.mxu0 0.0
    %405 = vmatprep.subr.mxu0 0.0
    %406 = vmatpush1.msra.mxu0 0.0
    %407 = vmatprep.subr.mxu0 0.0
    %408 = vmatpush1.msra.mxu0 0.0
    %409 = vmatprep.subr.mxu0 0.0
    %410 = vmatpush1.msra.mxu0 0.0
    %411 = vmatprep.subr.mxu0 0.0
    %412 = vmatpush1.msra.mxu0 0.0
    %413 = vmatprep.subr.mxu0 0.0
    %414 = vmatpush1.msra.mxu0 0.0
    %415 = vmatprep.subr.mxu0 0.0
    %416 = vmatpush1.msra.mxu0 0.0
    %417 = vmatprep.subr.mxu0 0.0
    %418 = vmatpush1.msra.mxu0 0.0
    %419 = vmatprep.subr.mxu0 0.0
    %420 = vmatpush1.msra.mxu0 0.0
    %421 = vmatprep.subr.mxu0 0.0
    %422 = vmatpush1.msra.mxu0 0.0
    %423 = vmatprep.subr.mxu0 0.0
    %424 = vmatpush1.msra.mxu0 0.0
    %425 = vmatprep.subr.mxu0 0.0
    %426 = vmatpush1.msra.mxu0 0.0
    %427 = vmatprep.subr.mxu0 0.0
    %428 = vmatpush1.msra.mxu0 0.0
    %429 = vmatprep.subr.mxu0 0.0
    %430 = vmatpush1.msra.mxu0 0.0
    %431 = vmatprep.subr.mxu0 0.0
    %432 = vmatpush1.msra.mxu0 0.0
    %433 = vmatprep.subr.mxu0 0.0
    %434 = vmatpush1.msra.mxu0 0.0
    %435 = vmatprep.subr.mxu0 0.0
    %436 = vmatpush1.msra.mxu0 0.0
    %437 = vmatprep.subr.mxu0 0.0
    %438 = vmatpush1.msra.mxu0 0.0
    %439 = vmatprep.subr.mxu0 0.0
    %440 = vmatpush1.msra.mxu0 0.0
    %441 = vmatprep.subr.mxu0 0.0
    %442 = vmatpush1.msra.mxu0 0.0
    %443 = vmatprep.mubr.f32.mxu0 0.0
    %444 = vmatmul.mubr.f32.gmra.mrb[0].mxu0 %v377
    %v445 = vpop.f32.mrb[0].mxu0
    %v446 = vadd.f32 %v373, %v445
    %v447 = vpop.f32.mrb[0].mxu0
    %v448 = vadd.f32 %v373, %v447
    %449 = vdwg.mxu0
    %450 = vmatprep.subr.mxu0 %v355
    %451 = vmatpush1.msra.mxu0 %v354
    %452 = vmatprep.subr.mxu0 %v359
    %453 = vmatpush1.msra.mxu0 %v358
    %454 = vmatprep.subr.mxu0 %v363
    %455 = vmatpush1.msra.mxu0 %v362
    %456 = vmatprep.subr.mxu0 %v367
    %457 = vmatpush1.msra.mxu0 %v366
    %458 = vmatprep.subr.mxu0 0.0
    %459 = vmatpush1.msra.mxu0 0.0
    %460 = vmatprep.subr.mxu0 0.0
    %461 = vmatpush1.msra.mxu0 0.0
    %462 = vmatprep.subr.mxu0 0.0
    %463 = vmatpush1.msra.mxu0 0.0
    %464 = vmatprep.subr.mxu0 0.0
    %465 = vmatpush1.msra.mxu0 0.0
    %466 = vmatprep.subr.mxu0 0.0
    %467 = vmatpush1.msra.mxu0 0.0
    %468 = vmatprep.subr.mxu0 0.0
    %469 = vmatpush1.msra.mxu0 0.0
    %470 = vmatprep.subr.mxu0 0.0
    %471 = vmatpush1.msra.mxu0 0.0
    %472 = vmatprep.subr.mxu0 0.0
    %473 = vmatpush1.msra.mxu0 0.0
    %474 = vmatprep.subr.mxu0 0.0
    %475 = vmatpush1.msra.mxu0 0.0
    %476 = vmatprep.subr.mxu0 0.0
    %477 = vmatpush1.msra.mxu0 0.0
    %478 = vmatprep.subr.mxu0 0.0
    %479 = vmatpush1.msra.mxu0 0.0
    %480 = vmatprep.subr.mxu0 0.0
    %481 = vmatpush1.msra.mxu0 0.0
    %482 = vmatprep.subr.mxu0 0.0
    %483 = vmatpush1.msra.mxu0 0.0
    %484 = vmatprep.subr.mxu0 0.0
    %485 = vmatpush1.msra.mxu0 0.0
    %486 = vmatprep.subr.mxu0 0.0
    %487 = vmatpush1.msra.mxu0 0.0
    %488 = vmatprep.subr.mxu0 0.0
    %489 = vmatpush1.msra.mxu0 0.0
    %490 = vmatprep.subr.mxu0 0.0
    %491 = vmatpush1.msra.mxu0 0.0
    %492 = vmatprep.subr.mxu0 0.0
    %493 = vmatpush1.msra.mxu0 0.0
    %494 = vmatprep.subr.mxu0 0.0
    %495 = vmatpush1.msra.mxu0 0.0
    %496 = vmatprep.subr.mxu0 0.0
    %497 = vmatpush1.msra.mxu0 0.0
    %498 = vmatprep.subr.mxu0 0.0
    %499 = vmatpush1.msra.mxu0 0.0
    %500 = vmatprep.subr.mxu0 0.0
    %501 = vmatpush1.msra.mxu0 0.0
    %502 = vmatprep.subr.mxu0 0.0
    %503 = vmatpush1.msra.mxu0 0.0
    %504 = vmatprep.subr.mxu0 0.0
    %505 = vmatpush1.msra.mxu0 0.0
    %506 = vmatprep.subr.mxu0 0.0
    %507 = vmatpush1.msra.mxu0 0.0
    %508 = vmatprep.subr.mxu0 0.0
    %509 = vmatpush1.msra.mxu0 0.0
    %510 = vmatprep.subr.mxu0 0.0
    %511 = vmatpush1.msra.mxu0 0.0
    %512 = vmatprep.subr.mxu0 0.0
    %513 = vmatpush1.msra.mxu0 0.0
    %514 = vmatprep.mubr.f32.mxu0 0.0
    %515 = vmatmul.mubr.f32.gmra.mrb[0].mxu0 %v377
    %v516 = vpop.f32.mrb[0].mxu0
    %v517 = vadd.f32 %v373, %v516
    %v518 = vpop.f32.mrb[0].mxu0
    %v519 = vadd.f32 %v373, %v518
    %520 = vdwg.mxu0
    %v521 = vstv %s36
    %v522 = vmul.f32 %v521, %v38
    %v523 = vmul.f32 %v521, %v39
    %v524 = vstv %s37
    %v525 = vmul.f32 %v524, %v446
    %v526 = vmul.f32 %v524, %v448
    %v527 = vmul.f32 %v524, %v517
    %v528 = vmul.f32 %v524, %v519
    %v533 = vcombine.low %v525, %v526
    %v534 = vcombine.low %v527, %v528
    %v537 = vadd.f32 %v522, %v533
    %v538 = vadd.f32 %v523, %v534
    %539 = vst [vmem:[%s6] sm:$0xff] %v537
    %540 = vst [vmem:[%s6 + $0x8] sm:$0xff] %v538
    // Predicated region
    $region30: #{closed_call.4} parent=1 // pred_check
      _
    $region31: #{closed_call.4} parent=1 // pred_check_branch
      %542 = sbr.rel (0) target = $region33
    $region32: #{closed_call.4} parent=1 // pred_region
      _
    $region33: #{closed_call.4} parent=1 // pred_fallthru
      _
    // Predicated region
    $region34: #{closed_call.4} parent=1 // pred_check
      _
    $region35: #{closed_call.4} parent=1 // pred_check_branch
      %544 = sbr.rel (0) target = $region37
    $region36: #{closed_call.4} parent=1 // pred_region
      _
    $region37: #{closed_call.4} parent=1 // pred_fallthru
      _
    %545 = vsyncpa [#allocation3], 1

</llo_original>
